<compile_context>
chip_gen: v6e
topology: v6e:2x2x1
jax: 0.10.0
libtpu: 0.0.40
codegen_flags: <defaults>
</compile_context>

<pallas_src>
import math
import functools

import jax
import jax.numpy as jnp
from jax.experimental import pallas as pl
from jax.experimental.pallas import tpu as pltpu


def _round_up(x, m):
    return ((x + m - 1) // m) * m


def _lora_kernel(x_ref, a_ref, b_ref, o_ref, *, scaling):
    # (TM, K) @ (K, r) -> (TM, r), f32 accumulation on the MXU.
    xa = jnp.dot(x_ref[...], a_ref[...], preferred_element_type=jnp.float32)
    # Scale the rank-r intermediate (N/r times cheaper than scaling the output)
    # and cast back to the streaming dtype for the second matmul.
    xa = (xa * scaling).astype(x_ref.dtype)
    # (TM, r) @ (r, N_pad) -> (TM, N_pad), lane-dense store.
    o_ref[...] = jnp.dot(
        xa, b_ref[...], preferred_element_type=jnp.float32
    ).astype(o_ref.dtype)


def _default_vmem_limit():
    """Half of physical VMEM, capped at 64 MiB; 32 MiB if the query fails.

    v5e/v6e: 128 MiB physical -> 64 MiB limit.  v7x: 64 MiB per TC -> 32 MiB.
    """
    try:
        info = pltpu.get_tpu_info()
        cap = getattr(info, "vmem_capacity_bytes", None)
        if cap:
            return min(int(cap) // 2, 64 * 1024 * 1024)
    except Exception:
        pass
    return 32 * 1024 * 1024  # safe default on every generation


def lora_forward(x, lora_A, lora_B, alpha, *, tm=None, vmem_limit_bytes=None):
    """LoRA forward: dropout(x @ A @ B) * (alpha / rank), with p = 0.0.

    x: (..., in_features) -> (..., out_features)
    """
    in_features, rank = lora_A.shape
    rank_b, out_features = lora_B.shape
    assert rank_b == rank
    scaling = alpha / rank

    # Dtype policy: both matmuls run in the activation dtype (bf16 activations
    # -> bf16 weights, full-rate MXU, half the resident weight VMEM).
    lora_A = lora_A.astype(x.dtype)
    lora_B = lora_B.astype(x.dtype)

    lead_shape = x.shape[:-1]
    M = math.prod(lead_shape) if lead_shape else 1
    x2d = x.reshape(M, in_features)

    # Lane-dense output: pad out_features to a multiple of 128 so the output
    # tile's last dim uses full (unmasked) vector stores.  No-op in the common
    # out_features % 128 == 0 case.
    n_pad = _round_up(out_features, 128)
    b_p = lora_B if n_pad == out_features else jnp.pad(
        lora_B, ((0, 0), (0, n_pad - out_features)))

    if vmem_limit_bytes is None:
        vmem_limit_bytes = _default_vmem_limit()
    vmem_limit_bytes = int(vmem_limit_bytes)

    itemsize = jnp.dtype(x.dtype).itemsize
    if tm is None:
        # Honest VMEM budget with ~10% headroom for internal scratch.
        budget = int(vmem_limit_bytes * 0.9)
        # Weights: budget for 2 buffers (worst case if single-buffering is
        # unavailable); they are tiny relative to the streamed tiles anyway.
        fixed = 2 * (in_features * rank + rank * n_pad) * itemsize
        per_row = (
            2 * in_features * itemsize   # x tile, double-buffered
            + 2 * n_pad * itemsize       # out tile, double-buffered
            + 4 * n_pad                  # f32 second-dot result (pre-cast)
            + 4 * rank + rank * itemsize # (TM, r) f32 intermediate + cast copy
        )
        tm = max(8, ((budget - fixed) // per_row) // 8 * 8)
    tm = max(8, (tm // 8) * 8)
    tm = min(tm, _round_up(M, 8))

    # Megacore: guarantee at least 2 row blocks so both TensorCores get work
    # on v7x (harmless extra ~0.35us step on single-TC chips).
    if M > 8 and pl.cdiv(M, tm) < 2:
        tm = max(8, _round_up(pl.cdiv(M, 2), 8))

    grid_m = pl.cdiv(M, tm)
    kernel = functools.partial(_lora_kernel, scaling=scaling)

    def _call(single_buffer_weights):
        if single_buffer_weights:
            # Constant index_map -> never re-fetched after step 0; a single
            # buffer frees VMEM that the row tile can use instead.
            a_spec = pl.BlockSpec((in_features, rank), lambda i: (0, 0),
                                  pipeline_mode=pl.Buffered(1))
            b_spec = pl.BlockSpec((rank, n_pad), lambda i: (0, 0),
                                  pipeline_mode=pl.Buffered(1))
        else:
            a_spec = pl.BlockSpec((in_features, rank), lambda i: (0, 0))
            b_spec = pl.BlockSpec((rank, n_pad), lambda i: (0, 0))

        return pl.pallas_call(
            kernel,
            out_shape=jax.ShapeDtypeStruct((M, n_pad), x.dtype),
            grid_spec=pl.GridSpec(
                grid=(grid_m,),
                in_specs=[
                    # x: tiled over rows, double-buffered by the pipeline; the
                    # ragged last block (M % tm != 0) is masked by Pallas.
                    pl.BlockSpec((tm, in_features), lambda i: (i, 0)),
                    a_spec,
                    b_spec,
                ],
                out_specs=pl.BlockSpec((tm, n_pad), lambda i: (i, 0)),
            ),
            compiler_params=pltpu.CompilerParams(
                # Row blocks are independent -> shard across TensorCores.
                dimension_semantics=("parallel",),
                vmem_limit_bytes=vmem_limit_bytes,
            ),
        )(x2d, lora_A, b_p)

    try:
        out2d = _call(True)
    except Exception:
        # pl.Buffered(1) on the constant weights is purely an optimization;
        # fall back to default double-buffering if this build rejects it.
        out2d = _call(False)

    if n_pad != out_features:
        out2d = out2d[:, :out_features]
    return out2d.reshape(*lead_shape, out_features)


if __name__ == "__main__":
    # Small shapes consistent with the module's forward.
    batch, seq = 2, 8
    in_features, out_features, rank, alpha = 32, 32, 4, 1.0

    key = jax.random.PRNGKey(0)
    kx, ka, kb, kx2 = jax.random.split(key, 4)

    x = jax.random.normal(kx, (batch, seq, in_features), dtype=jnp.float32)

    # kaiming_uniform_(a=sqrt(5)) on an (in_features, rank) tensor:
    # fan_in = rank, gain = sqrt(2/(1+5)), bound = gain*sqrt(3/fan_in) = 1/sqrt(rank)
    bound = 1.0 / math.sqrt(rank)
    lora_A = jax.random.uniform(ka, (in_features, rank), jnp.float32,
                                minval=-bound, maxval=bound)
    # The reference module zero-inits lora_B (output would be exactly zero);
    # use a small random B so the kernel math is non-trivially exercised.
    lora_B = 0.01 * jax.random.normal(kb, (rank, out_features), dtype=jnp.float32)

    scaling = alpha / rank

    out = jax.block_until_ready(lora_forward(x, lora_A, lora_B, alpha))
    ref = (x @ lora_A @ lora_B) * scaling
    assert out.shape == (batch, seq, out_features)
    assert jnp.allclose(out, ref, atol=1e-5, rtol=1e-5), "mismatch vs reference"

    # Second case with M not a multiple of the row tile to exercise the
    # ragged-last-block path (no wrapper-side row padding any more).
    x_odd = jax.random.normal(kx2, (3, 5, in_features), dtype=jnp.float32)
    out_odd = jax.block_until_ready(lora_forward(x_odd, lora_A, lora_B, alpha))
    ref_odd = (x_odd @ lora_A @ lora_B) * scaling
    assert out_odd.shape == (3, 5, out_features)
    assert jnp.allclose(out_odd, ref_odd, atol=1e-5, rtol=1e-5), "mismatch (ragged M)"

    print("KERNEL_OK")
</pallas_src>

<mosaic_0001>
module attributes {stable_mosaic.version = 11 : i64} {
  func.func @_lora_kernel(%arg0: i32, %arg1: memref<8x32xf32, #tpu.memory_space<vmem>>, %arg2: memref<32x4xf32, #tpu.memory_space<vmem>>, %arg3: memref<4x128xf32, #tpu.memory_space<vmem>>, %arg4: memref<8x128xf32, #tpu.memory_space<vmem>>) attributes {dimension_semantics = [#tpu.dimension_semantics<parallel>], iteration_bounds = array<i64: 2>, scalar_prefetch = 0 : i64, scratch_operands = 0 : i64, tpu.core_type = #tpu.core_type<tc>, window_params = [{transform_indices = @transform_0, window_bounds = array<i64: 8, 32>}, {pipeline_mode = #tpu.pipeline_mode<synchronous>, transform_indices = @transform_1, window_bounds = array<i64: 32, 4>}, {pipeline_mode = #tpu.pipeline_mode<synchronous>, transform_indices = @transform_2, window_bounds = array<i64: 4, 128>}, {transform_indices = @transform_3, window_bounds = array<i64: 8, 128>}]} {
    %c0 = arith.constant 0 : index
    %c0_0 = arith.constant 0 : index
    %0 = vector.load %arg1[%c0, %c0_0] : memref<8x32xf32, #tpu.memory_space<vmem>>, vector<8x32xf32>
    %c0_1 = arith.constant 0 : index
    %c0_2 = arith.constant 0 : index
    %1 = vector.load %arg2[%c0_1, %c0_2] : memref<32x4xf32, #tpu.memory_space<vmem>>, vector<32x4xf32>
    %cst = arith.constant dense<0.000000e+00> : vector<8x4xf32>
    %2 = tpu.matmul %0, %1, %cst {dimension_numbers = #tpu.dot_dimension_numbers<[1], [0], [0], [1], [0, 0, 1, 1], [], []>} : vector<8x32xf32>, vector<32x4xf32>, vector<8x4xf32> -> vector<8x4xf32>
    %cst_3 = arith.constant 2.500000e-01 : f32
    %3 = vector.broadcast %cst_3 : f32 to vector<8x4xf32>
    %4 = arith.mulf %2, %3 : vector<8x4xf32>
    %c0_4 = arith.constant 0 : index
    %c0_5 = arith.constant 0 : index
    %5 = vector.load %arg3[%c0_4, %c0_5] : memref<4x128xf32, #tpu.memory_space<vmem>>, vector<4x128xf32>
    %cst_6 = arith.constant dense<0.000000e+00> : vector<8x128xf32>
    %6 = tpu.matmul %4, %5, %cst_6 {dimension_numbers = #tpu.dot_dimension_numbers<[1], [0], [0], [1], [0, 0, 1, 1], [], []>} : vector<8x4xf32>, vector<4x128xf32>, vector<8x128xf32> -> vector<8x128xf32>
    %c0_7 = arith.constant 0 : index
    %c0_8 = arith.constant 0 : index
    %7 = vector.load %arg4[%c0_7, %c0_8] : memref<8x128xf32, #tpu.memory_space<vmem>>, vector<8x128xf32>
    tpu.vector_store %arg4[%c0_7, %c0_8], %6 {strides = array<i32>} : memref<8x128xf32, #tpu.memory_space<vmem>>, vector<8x128xf32>,
    return
  }
  func.func @transform_0(%arg0: i32) -> (i32, i32) {
    %c0_i32 = arith.constant 0 : i32
    %c0_i32_0 = arith.constant 0 : i32
    return %arg0, %c0_i32 : i32, i32
  }
  func.func @transform_1(%arg0: i32) -> (i32, i32) {
    %c0_i32 = arith.constant 0 : i32
    %c0_i32_0 = arith.constant 0 : i32
    %c0_i32_1 = arith.constant 0 : i32
    return %c0_i32, %c0_i32_0 : i32, i32
  }
  func.func @transform_2(%arg0: i32) -> (i32, i32) {
    %c0_i32 = arith.constant 0 : i32
    %c0_i32_0 = arith.constant 0 : i32
    %c0_i32_1 = arith.constant 0 : i32
    return %c0_i32, %c0_i32_0 : i32, i32
  }
  func.func @transform_3(%arg0: i32) -> (i32, i32) {
    %c0_i32 = arith.constant 0 : i32
    %c0_i32_0 = arith.constant 0 : i32
    return %arg0, %c0_i32 : i32, i32
  }
}

module attributes {stable_mosaic.version = 11 : i64} {
  func.func @_lora_kernel(%arg0: i32, %arg1: memref<8x32xf32, #tpu.memory_space<vmem>>, %arg2: memref<32x4xf32, #tpu.memory_space<vmem>>, %arg3: memref<4x128xf32, #tpu.memory_space<vmem>>, %arg4: memref<8x128xf32, #tpu.memory_space<vmem>>) attributes {dimension_semantics = [#tpu.dimension_semantics<parallel>], iteration_bounds = array<i64: 2>, scalar_prefetch = 0 : i64, scratch_operands = 0 : i64, tpu.core_type = #tpu.core_type<tc>, window_params = [{transform_indices = @transform_0, window_bounds = array<i64: 8, 32>}, {pipeline_mode = #tpu.pipeline_mode<synchronous>, transform_indices = @transform_1, window_bounds = array<i64: 32, 4>}, {pipeline_mode = #tpu.pipeline_mode<synchronous>, transform_indices = @transform_2, window_bounds = array<i64: 4, 128>}, {transform_indices = @transform_3, window_bounds = array<i64: 8, 128>}]} {
    %c0 = arith.constant 0 : index
    %c0_0 = arith.constant 0 : index
    %0 = vector.load %arg1[%c0, %c0_0] : memref<8x32xf32, #tpu.memory_space<vmem>>, vector<8x32xf32>
    %c0_1 = arith.constant 0 : index
    %c0_2 = arith.constant 0 : index
    %1 = vector.load %arg2[%c0_1, %c0_2] : memref<32x4xf32, #tpu.memory_space<vmem>>, vector<32x4xf32>
    %cst = arith.constant dense<0.000000e+00> : vector<8x4xf32>
    %2 = tpu.matmul %0, %1, %cst {dimension_numbers = #tpu.dot_dimension_numbers<[1], [0], [0], [1], [0, 0, 1, 1], [], []>} : vector<8x32xf32>, vector<32x4xf32>, vector<8x4xf32> -> vector<8x4xf32>
    %cst_3 = arith.constant 2.500000e-01 : f32
    %3 = vector.broadcast %cst_3 : f32 to vector<8x4xf32>
    %4 = arith.mulf %2, %3 : vector<8x4xf32>
    %c0_4 = arith.constant 0 : index
    %c0_5 = arith.constant 0 : index
    %5 = vector.load %arg3[%c0_4, %c0_5] : memref<4x128xf32, #tpu.memory_space<vmem>>, vector<4x128xf32>
    %cst_6 = arith.constant dense<0.000000e+00> : vector<8x128xf32>
    %6 = tpu.matmul %4, %5, %cst_6 {dimension_numbers = #tpu.dot_dimension_numbers<[1], [0], [0], [1], [0, 0, 1, 1], [], []>} : vector<8x4xf32>, vector<4x128xf32>, vector<8x128xf32> -> vector<8x128xf32>
    %c0_7 = arith.constant 0 : index
    %c0_8 = arith.constant 0 : index
    %7 = vector.load %arg4[%c0_7, %c0_8] : memref<8x128xf32, #tpu.memory_space<vmem>>, vector<8x128xf32>
    tpu.vector_store %arg4[%c0_7, %c0_8], %6 {strides = array<i32>} : memref<8x128xf32, #tpu.memory_space<vmem>>, vector<8x128xf32>,
    return
  }
  func.func @transform_0(%arg0: i32) -> (i32, i32) {
    %c0_i32 = arith.constant 0 : i32
    %c0_i32_0 = arith.constant 0 : i32
    return %arg0, %c0_i32 : i32, i32
  }
  func.func @transform_1(%arg0: i32) -> (i32, i32) {
    %c0_i32 = arith.constant 0 : i32
    %c0_i32_0 = arith.constant 0 : i32
    %c0_i32_1 = arith.constant 0 : i32
    return %c0_i32, %c0_i32_0 : i32, i32
  }
  func.func @transform_2(%arg0: i32) -> (i32, i32) {
    %c0_i32 = arith.constant 0 : i32
    %c0_i32_0 = arith.constant 0 : i32
    %c0_i32_1 = arith.constant 0 : i32
    return %c0_i32, %c0_i32_0 : i32, i32
  }
  func.func @transform_3(%arg0: i32) -> (i32, i32) {
    %c0_i32 = arith.constant 0 : i32
    %c0_i32_0 = arith.constant 0 : i32
    return %arg0, %c0_i32 : i32, i32
  }
}

</mosaic_0001>

<llo_original>
// kernel: tpu_custom_call.1
$region0: #{tpu_custom_call.1}
  #allocation0 [shape = 'u32[]', space=smem, size = 0x4, offset = 0x4, fixed_abs, tag = 'smem constant byte address 0x4 - core index']
  #allocation1 [shape = 'u32[144,128]{1,0:T(1,128)}', space=vmem, size = 0x12000, scoped, tag = 'internal scratch']
  %s0 = inlined_call_operand.vmem [shape: f32[16,32], index: 0, kind: input, shape index: {}]
  %s1 = inlined_call_operand.vmem [shape: f32[32,4], index: 1, kind: input, shape index: {}]
  %s2 = inlined_call_operand.vmem [shape: f32[4,128], index: 2, kind: input, shape index: {}]
  %s3 = inlined_call_operand.hbm [shape: f32[16,128], index: 3, kind: output, shape index: {}]
  %s4 = sld [smem:[#allocation0]]
  $region45: #{tpu_custom_call.1} parent=0
    _
  %s6 = ssub.s32 1, %s4
  %s7 = scalar_select 0, %s6, %s4
  $region1: #{tpu_custom_call.1} parent=0
    #allocation2 [shape = 'u8[8192]{0}', space=vmem, size = 0x2000, scoped, tag = 'output window, operand 0']
    #allocation3 [shape = 's32[2]{0}', space=sflag, size = 0x8, scoped, tag = 'scoped memory for tpu_custom_call.1']
    %8 = vsyncpa [#allocation3], 0
    %s9 = scalar_lea.sflag [#allocation3], 1
    %10 = vsyncpa %s9, 0
    loop: start=0, step=1, limit=4
    $region2: #{tpu_custom_call.1} parent=1 // loop_pre_header
      _
    $region3: #{tpu_custom_call.1} parent=1 // loop_header
      %s12 = sphi 0, %s16
      %p13 = scmp.ge.s32.totalorder %s12, 4
      %s22 = sphi 0, %s24
      %s25 = sphi 0, %s22
      %s26 = sphi 0, %s25
      %s42 = sphi 0, %s26
      %s46 = sphi 0, %s46
      %s48 = sphi 0, %s46
      %s49 = sphi 0, %s48
      %s63 = sphi 0, %s49
      %s67 = sphi 0, %s67
      %s69 = sphi 0, %s67
      %s70 = sphi 0, %s69
      %s84 = sphi 0, %s70
      %s90 = sphi 0, %s92
      %s93 = sphi 0, %s90
      %s94 = sphi 0, %s93
      %s110 = sphi 0, %s94
    $region4: #{tpu_custom_call.1} parent=1 // loop_header_branch
      %15 = sbr.rel (%p13) target = $region8
    $region5: #{tpu_custom_call.1} parent=1 // loop_body
      %s17 = ssub.s32 %s12, 1
      %s18 = ssub.s32 %s12, 2
      %s19 = sadd.s32 %s12, 1
      %s20 = ssub.s32 %s12, %s19
      %p21 = scmp.eq.s32.totalorder %s20, 0
      %s23 = sadd.s32 %s22, 1
      %s24 = scalar_select %p21, %s22, %s23
      %p27 = pneg %p21
      %p28 = scmp.eq.s32.totalorder %s12, 1
      %p29 = por %p27, %p28
      %p30 = scmp.ne.s32.totalorder %s22, %s25
      %p31 = scmp.eq.s32.totalorder %s12, 0
      %p32 = por %p30, %p31
      %p33 = scmp.ne.s32.totalorder %s22, %s25
      %p34 = scmp.eq.s32.totalorder %s17, 1
      %p35 = por %p33, %p34
      %p36 = scmp.ne.s32.totalorder %s25, %s26
      %p37 = scmp.eq.s32.totalorder %s17, 0
      %p38 = por %p36, %p37
      %p39 = scmp.ne.s32.totalorder %s25, %s26
      %p40 = scmp.eq.s32.totalorder %s18, 1
      %p41 = por %p39, %p40
      %p43 = scmp.ne.s32.totalorder %s26, %s42
      %p44 = scmp.eq.s32.totalorder %s18, 0
      %p45 = por %p43, %p44
      %s47 = sadd.s32 %s46, 1
      %p50 = scmp.eq.s32.totalorder %s12, 1
      %p51 = scmp.ne.s32.totalorder %s46, %s48
      %p52 = scmp.eq.s32.totalorder %s12, 0
      %p53 = por %p51, %p52
      %p54 = scmp.ne.s32.totalorder %s46, %s48
      %p55 = scmp.eq.s32.totalorder %s17, 1
      %p56 = por %p54, %p55
      %p57 = scmp.ne.s32.totalorder %s48, %s49
      %p58 = scmp.eq.s32.totalorder %s17, 0
      %p59 = por %p57, %p58
      %p60 = scmp.ne.s32.totalorder %s48, %s49
      %p61 = scmp.eq.s32.totalorder %s18, 1
      %p62 = por %p60, %p61
      %p64 = scmp.ne.s32.totalorder %s49, %s63
      %p65 = scmp.eq.s32.totalorder %s18, 0
      %p66 = por %p64, %p65
      %s68 = sadd.s32 %s67, 1
      %p71 = scmp.eq.s32.totalorder %s12, 1
      %p72 = scmp.ne.s32.totalorder %s67, %s69
      %p73 = scmp.eq.s32.totalorder %s12, 0
      %p74 = por %p72, %p73
      %p75 = scmp.ne.s32.totalorder %s67, %s69
      %p76 = scmp.eq.s32.totalorder %s17, 1
      %p77 = por %p75, %p76
      %p78 = scmp.ne.s32.totalorder %s69, %s70
      %p79 = scmp.eq.s32.totalorder %s17, 0
      %p80 = por %p78, %p79
      %p81 = scmp.ne.s32.totalorder %s69, %s70
      %p82 = scmp.eq.s32.totalorder %s18, 1
      %p83 = por %p81, %p82
      %p85 = scmp.ne.s32.totalorder %s70, %s84
      %p86 = scmp.eq.s32.totalorder %s18, 0
      %p87 = por %p85, %p86
      %s88 = ssub.s32 %s12, %s19
      %p89 = scmp.eq.s32.totalorder %s88, 0
      %s91 = sadd.s32 %s90, 1
      %s92 = scalar_select %p89, %s90, %s91
      %p95 = pneg %p89
      %p96 = scmp.eq.s32.totalorder %s12, 1
      %p97 = por %p95, %p96
      %p98 = scmp.ne.s32.totalorder %s90, %s93
      %p99 = scmp.eq.s32.totalorder %s12, 0
      %p100 = por %p98, %p99
      %p101 = scmp.ne.s32.totalorder %s90, %s93
      %p102 = scmp.eq.s32.totalorder %s17, 1
      %p103 = por %p101, %p102
      %p104 = scmp.ne.s32.totalorder %s93, %s94
      %p105 = scmp.eq.s32.totalorder %s17, 0
      %p106 = por %p104, %p105
      %p107 = scmp.ne.s32.totalorder %s93, %s94
      %p108 = scmp.eq.s32.totalorder %s18, 1
      %p109 = por %p107, %p108
      %p111 = scmp.ne.s32.totalorder %s94, %s110
      %p112 = scmp.eq.s32.totalorder %s18, 0
      %p113 = por %p111, %p112
      %p114 = scmp.le.s32.totalorder 1, %s12
      %p115 = scmp.lt.s32.totalorder %s12, 3
      %p116 = pnand %p114, %p115
      %p117 = pneg %p116
      // Predicated region
      $region9: #{tpu_custom_call.1} parent=5 // pred_check
        _
      $region10: #{tpu_custom_call.1} parent=5 // pred_check_branch
        %119 = sbr.rel (%p116) target = $region12
      $region11: #{tpu_custom_call.1} parent=5 // pred_region
        %s120 = ssub.s32 %s12, 1
        // Predicated region
        $region13: #{tpu_custom_call.1} parent=11 // pred_check
          %p121 = pneg %p59
        $region14: #{tpu_custom_call.1} parent=11 // pred_check_branch
          %123 = sbr.rel (%p121) target = $region16
        $region15: #{tpu_custom_call.1} parent=11 // pred_region
          _
        $region16: #{tpu_custom_call.1} parent=11 // pred_fallthru
          _
        // Predicated region
        $region17: #{tpu_custom_call.1} parent=11 // pred_check
          %p124 = pneg %p80
        $region18: #{tpu_custom_call.1} parent=11 // pred_check_branch
          %126 = sbr.rel (%p124) target = $region20
        $region19: #{tpu_custom_call.1} parent=11 // pred_region
          _
        $region20: #{tpu_custom_call.1} parent=11 // pred_fallthru
          _
      $region12: #{tpu_custom_call.1} parent=5 // pred_fallthru
        _
      %p127 = scmp.lt.s32.totalorder %s12, 2
      // Predicated region
      $region21: #{tpu_custom_call.1} parent=5 // pred_check
        %p128 = pneg %p127
      $region22: #{tpu_custom_call.1} parent=5 // pred_check_branch
        %130 = sbr.rel (%p128) target = $region24
      $region23: #{tpu_custom_call.1} parent=5 // pred_region
        // Predicated region
        $region25: #{tpu_custom_call.1} parent=23 // pred_check
          %p131 = pneg %p32
        $region26: #{tpu_custom_call.1} parent=23 // pred_check_branch
          %133 = sbr.rel (%p131) target = $region28
        $region27: #{tpu_custom_call.1} parent=23 // pred_region
          %p134 = scmp.lt.s32.totalorder %s12, 1
          %s135 = scalar_select %p134, %s12, 1
          %s136 = smul.addr %s135, 8
          %s137 = scalar_lea.vmem %s0, %s136
        $region28: #{tpu_custom_call.1} parent=23 // pred_fallthru
          _
      $region24: #{tpu_custom_call.1} parent=5 // pred_fallthru
        _
      %p138 = scmp.le.s32.totalorder 1, %s12
      %p139 = scmp.lt.s32.totalorder %s12, 3
      %p140 = pnand %p138, %p139
      %p141 = pneg %p140
      // Predicated region
      $region29: #{tpu_custom_call.1} parent=5 // pred_check
        _
      $region30: #{tpu_custom_call.1} parent=5 // pred_check_branch
        %143 = sbr.rel (%p140) target = $region32
      $region31: #{tpu_custom_call.1} parent=5 // pred_region
        %s144 = ssub.s32 %s12, 1
        %p145 = scmp.lt.s32.totalorder %s17, 1
        %s146 = scalar_select %p145, %s17, 1
        %s147 = smul.addr %s146, 8
        %s148 = scalar_lea.vmem %s0, %s147
        %p149 = pneg %p38
        %p150 = pneg %p35
        %p151 = pneg %p59
        %p152 = pneg %p56
        %p153 = pneg %p80
        %p154 = pneg %p77
        %p155 = pneg %p106
        %p156 = pneg %p103
        %s157 = sand.u32 %s93, 1
        %s158 = scalar_lea.sflag [#allocation3], %s157
        %s159 = sand.u32 %s93, 1
        %s160 = smul.addr %s159, 8
        %s161 = scalar_lea.vmem [#allocation2], %s160
        %p162 = scmp.lt.s32.totalorder %s17, 1
        %s163 = scalar_select %p162, %s17, 1
        %s164 = smul.addr %s163, 8
        %s165 = scalar_lea.vmem %s0, %s164
        %v166 = vld [vmem:[%s165] sm:$0xff]
        %v167 = vld [vmem:[%s1] sm:$0xff]
        %v168 = vld [vmem:[%s1 + $0x8] sm:$0xff]
        %v169 = vld [vmem:[%s1 + $0x10] sm:$0xff]
        %v170 = vld [vmem:[%s1 + $0x18] sm:$0xff]
        %vm171 = vcmask 261120
        %v173 = vsel %vm171, %v166, 0
        %175 = vmatprep.subr.mxu0 0.0
        %176 = vmatpush1.msra.mxu0 0.0
        %177 = vmatprep.subr.mxu0 0.0
        %178 = vmatpush1.msra.mxu0 0.0
        %179 = vmatprep.subr.mxu0 0.0
        %180 = vmatpush1.msra.mxu0 0.0
        %181 = vmatprep.subr.mxu0 0.0
        %182 = vmatpush1.msra.mxu0 0.0
        %183 = vmatprep.subr.mxu0 0.0
        %184 = vmatpush1.msra.mxu0 0.0
        %185 = vmatprep.subr.mxu0 0.0
        %186 = vmatpush1.msra.mxu0 0.0
        %187 = vmatprep.subr.mxu0 0.0
        %188 = vmatpush1.msra.mxu0 0.0
        %189 = vmatprep.subr.mxu0 0.0
        %190 = vmatpush1.msra.mxu0 0.0
        %191 = vmatprep.subr.mxu0 0.0
        %192 = vmatpush1.msra.mxu0 0.0
        %193 = vmatprep.subr.mxu0 0.0
        %194 = vmatpush1.msra.mxu0 0.0
        %195 = vmatprep.subr.mxu0 0.0
        %196 = vmatpush1.msra.mxu0 0.0
        %197 = vmatprep.subr.mxu0 0.0
        %198 = vmatpush1.msra.mxu0 0.0
        %199 = vmatprep.subr.mxu0 0.0
        %200 = vmatpush1.msra.mxu0 %v170
        %201 = vmatprep.subr.mxu0 0.0
        %202 = vmatpush1.msra.mxu0 %v169
        %203 = vmatprep.subr.mxu0 0.0
        %204 = vmatpush1.msra.mxu0 %v168
        %205 = vmatprep.subr.mxu0 0.0
        %206 = vmatpush1.msra.mxu0 %v167
        %207 = vmatprep.subr.mxu0 0.0
        %208 = vmatpush2.msra.mxu0 0.0
        %209 = vmatprep.subr.mxu0 0.0
        %210 = vmatpush2.msra.mxu0 0.0
        %211 = vmatprep.subr.mxu0 0.0
        %212 = vmatpush2.msra.mxu0 0.0
        %213 = vmatprep.subr.mxu0 0.0
        %214 = vmatpush2.msra.mxu0 0.0
        %215 = vmatprep.subr.mxu0 0.0
        %216 = vmatpush2.msra.mxu0 0.0
        %217 = vmatprep.subr.mxu0 0.0
        %218 = vmatpush2.msra.mxu0 0.0
        %219 = vmatprep.subr.mxu0 0.0
        %220 = vmatpush2.msra.mxu0 0.0
        %221 = vmatprep.subr.mxu0 0.0
        %222 = vmatpush2.msra.mxu0 0.0
        %223 = vmatprep.subr.mxu0 0.0
        %224 = vmatpush2.msra.mxu0 0.0
        %225 = vmatprep.subr.mxu0 0.0
        %226 = vmatpush2.msra.mxu0 0.0
        %227 = vmatprep.subr.mxu0 0.0
        %228 = vmatpush2.msra.mxu0 0.0
        %229 = vmatprep.subr.mxu0 0.0
        %230 = vmatpush2.msra.mxu0 0.0
        %231 = vmatprep.subr.mxu0 0.0
        %232 = vmatpush2.msra.mxu0 0.0
        %233 = vmatprep.subr.mxu0 0.0
        %234 = vmatpush2.msra.mxu0 0.0
        %235 = vmatprep.subr.mxu0 0.0
        %236 = vmatpush2.msra.mxu0 0.0
        %237 = vmatprep.subr.mxu0 0.0
        %238 = vmatpush2.msra.mxu0 0.0
        %239 = vmatprep.mubr.f32.mxu0 0.0
        %240 = vmatmul.mubr.f32.gmra.mxu0 %v173
        %v241 = vpop.f32.mrf.mxu0
        %v242 = vadd.f32 0.0, %v241
        %v243 = vpop.f32.mrf.mxu0
        %244 = vdwg.mxu0
        %v245 = vmul.f32 %v242, 0.25
        %v246 = vld [vmem:[%s2] sm:$0xf]
        %vm247 = vcmask 31744
        %v249 = vsel %vm247, %v245, 0
        %vm251 = vcmask 1043456
        %v253 = vsel %vm251, %v246, 0
        %255 = vmatprep.subr.mxu0 0.0
        %256 = vmatpush1.msra.mxu0 0.0
        %257 = vmatprep.subr.mxu0 0.0
        %258 = vmatpush1.msra.mxu0 0.0
        %259 = vmatprep.subr.mxu0 0.0
        %260 = vmatpush1.msra.mxu0 0.0
        %261 = vmatprep.subr.mxu0 0.0
        %262 = vmatpush1.msra.mxu0 0.0
        %263 = vmatprep.subr.mxu0 0.0
        %264 = vmatpush1.msra.mxu0 0.0
        %265 = vmatprep.subr.mxu0 0.0
        %266 = vmatpush1.msra.mxu0 0.0
        %267 = vmatprep.subr.mxu0 0.0
        %268 = vmatpush1.msra.mxu0 0.0
        %269 = vmatprep.subr.mxu0 0.0
        %270 = vmatpush1.msra.mxu0 0.0
        %271 = vmatprep.subr.mxu0 0.0
        %272 = vmatpush1.msra.mxu0 0.0
        %273 = vmatprep.subr.mxu0 0.0
        %274 = vmatpush1.msra.mxu0 0.0
        %275 = vmatprep.subr.mxu0 0.0
        %276 = vmatpush1.msra.mxu0 0.0
        %277 = vmatprep.subr.mxu0 0.0
        %278 = vmatpush1.msra.mxu0 0.0
        %279 = vmatprep.subr.mxu0 0.0
        %280 = vmatpush1.msra.mxu0 0.0
        %281 = vmatprep.subr.mxu0 0.0
        %282 = vmatpush1.msra.mxu0 0.0
        %283 = vmatprep.subr.mxu0 0.0
        %284 = vmatpush1.msra.mxu0 0.0
        %285 = vmatprep.subr.mxu0 0.0
        %286 = vmatpush1.msra.mxu0 %v253
        %287 = vmatprep.subr.mxu0 0.0
        %288 = vmatpush2.msra.mxu0 0.0
        %289 = vmatprep.subr.mxu0 0.0
        %290 = vmatpush2.msra.mxu0 0.0
        %291 = vmatprep.subr.mxu0 0.0
        %292 = vmatpush2.msra.mxu0 0.0
        %293 = vmatprep.subr.mxu0 0.0
        %294 = vmatpush2.msra.mxu0 0.0
        %295 = vmatprep.subr.mxu0 0.0
        %296 = vmatpush2.msra.mxu0 0.0
        %297 = vmatprep.subr.mxu0 0.0
        %298 = vmatpush2.msra.mxu0 0.0
        %299 = vmatprep.subr.mxu0 0.0
        %300 = vmatpush2.msra.mxu0 0.0
        %301 = vmatprep.subr.mxu0 0.0
        %302 = vmatpush2.msra.mxu0 0.0
        %303 = vmatprep.subr.mxu0 0.0
        %304 = vmatpush2.msra.mxu0 0.0
        %305 = vmatprep.subr.mxu0 0.0
        %306 = vmatpush2.msra.mxu0 0.0
        %307 = vmatprep.subr.mxu0 0.0
        %308 = vmatpush2.msra.mxu0 0.0
        %309 = vmatprep.subr.mxu0 0.0
        %310 = vmatpush2.msra.mxu0 0.0
        %311 = vmatprep.subr.mxu0 0.0
        %312 = vmatpush2.msra.mxu0 0.0
        %313 = vmatprep.subr.mxu0 0.0
        %314 = vmatpush2.msra.mxu0 0.0
        %315 = vmatprep.subr.mxu0 0.0
        %316 = vmatpush2.msra.mxu0 0.0
        %317 = vmatprep.subr.mxu0 0.0
        %318 = vmatpush2.msra.mxu0 0.0
        %319 = vmatprep.mubr.f32.mxu0 0.0
        %320 = vmatmul.mubr.f32.gmra.mxu0 %v249
        %v321 = vpop.f32.mrf.mxu0
        %v322 = vadd.f32 0.0, %v321
        %v323 = vpop.f32.mrf.mxu0
        %324 = vdwg.mxu0
        %325 = vst [vmem:[%s161] sm:$0xff] %v322
        %s326 = sand.u32 %s93, 1
        %s327 = scalar_lea.sflag [#allocation3], %s326
        %s328 = sand.u32 %s93, 1
        %s329 = smul.addr %s328, 8
        %s330 = scalar_lea.vmem [#allocation2], %s329
        // Predicated region
        $region33: #{tpu_custom_call.1} parent=31 // pred_check
          %p331 = pneg %p103
        $region34: #{tpu_custom_call.1} parent=31 // pred_check_branch
          %333 = sbr.rel (%p331) target = $region36
        $region35: #{tpu_custom_call.1} parent=31 // pred_region
          %s335 = ssub.s32 128, 128
          %336 = vsyncadd %s327, %s335
          %s337 = smul.addr %s17, 128
          %s338 = scalar_lea.hbm %s3, %s337
          %s340 = sshll.u32 %s330, 4
          %s341 = int_to_ptr.vmem [resolvable:$true] %s340
          %343 = dma.vmem_to_hbm [thread:$0]  %s341, 128, %s338, %s327
        $region36: #{tpu_custom_call.1} parent=31 // pred_fallthru
          _
      $region32: #{tpu_custom_call.1} parent=5 // pred_fallthru
        _
      %p344 = scmp.le.s32.totalorder 2, %s12
      // Predicated region
      $region37: #{tpu_custom_call.1} parent=5 // pred_check
        %p345 = pneg %p344
      $region38: #{tpu_custom_call.1} parent=5 // pred_check_branch
        %347 = sbr.rel (%p345) target = $region40
      $region39: #{tpu_custom_call.1} parent=5 // pred_region
        %s348 = ssub.s32 %s12, 2
        // Predicated region
        $region41: #{tpu_custom_call.1} parent=39 // pred_check
          %p349 = pneg %p109
        $region42: #{tpu_custom_call.1} parent=39 // pred_check_branch
          %351 = sbr.rel (%p349) target = $region44
        $region43: #{tpu_custom_call.1} parent=39 // pred_region
          %s352 = sand.u32 %s94, 1
          %s353 = scalar_lea.sflag [#allocation3], %s352
          %s354 = sand.u32 %s94, 1
          %s355 = smul.addr %s354, 8
          %s356 = scalar_lea.vmem [#allocation2], %s355
          %357 = dma.done %s353, 128
        $region44: #{tpu_custom_call.1} parent=39 // pred_fallthru
          _
      $region40: #{tpu_custom_call.1} parent=5 // pred_fallthru
        _
    $region6: #{tpu_custom_call.1} parent=1 // loop_footer
      %s16 = sadd.s32 1, %s12
    $region7: #{tpu_custom_call.1} parent=1 // loop_footer_branch
      %11 = sbr.rel target = $region3
    $region8: #{tpu_custom_call.1} parent=1 // loop_exit
      _
    %358 = vsyncpa [#allocation3], 1
    %s359 = scalar_lea.sflag [#allocation3], 1
    %360 = vsyncpa %s359, 1

// kernel: tpu_custom_call.1
$region0: #{tpu_custom_call.1}
  #allocation0 [shape = 'u32[]', space=smem, size = 0x4, offset = 0x4, fixed_abs, tag = 'smem constant byte address 0x4 - core index']
  #allocation1 [shape = 'u32[144,128]{1,0:T(1,128)}', space=vmem, size = 0x12000, scoped, tag = 'internal scratch']
  %s0 = inlined_call_operand.vmem [shape: f32[16,32], index: 0, kind: input, shape index: {}]
  %s1 = inlined_call_operand.vmem [shape: f32[32,4], index: 1, kind: input, shape index: {}]
  %s2 = inlined_call_operand.vmem [shape: f32[4,128], index: 2, kind: input, shape index: {}]
  %s3 = inlined_call_operand.hbm [shape: f32[16,128], index: 3, kind: output, shape index: {}]
  %s4 = sld [smem:[#allocation0]]
  $region45: #{tpu_custom_call.1} parent=0
    _
  %s6 = ssub.s32 1, %s4
  %s7 = scalar_select 0, %s6, %s4
  $region1: #{tpu_custom_call.1} parent=0
    #allocation2 [shape = 'u8[8192]{0}', space=vmem, size = 0x2000, scoped, tag = 'output window, operand 0']
    #allocation3 [shape = 's32[2]{0}', space=sflag, size = 0x8, scoped, tag = 'scoped memory for tpu_custom_call.1']
    %8 = vsyncpa [#allocation3], 0
    %s9 = scalar_lea.sflag [#allocation3], 1
    %10 = vsyncpa %s9, 0
    loop: start=0, step=1, limit=4
    $region2: #{tpu_custom_call.1} parent=1 // loop_pre_header
      _
    $region3: #{tpu_custom_call.1} parent=1 // loop_header
      %s12 = sphi 0, %s16
      %p13 = scmp.ge.s32.totalorder %s12, 4
      %s22 = sphi 0, %s24
      %s25 = sphi 0, %s22
      %s26 = sphi 0, %s25
      %s42 = sphi 0, %s26
      %s46 = sphi 0, %s46
      %s48 = sphi 0, %s46
      %s49 = sphi 0, %s48
      %s63 = sphi 0, %s49
      %s67 = sphi 0, %s67
      %s69 = sphi 0, %s67
      %s70 = sphi 0, %s69
      %s84 = sphi 0, %s70
      %s90 = sphi 0, %s92
      %s93 = sphi 0, %s90
      %s94 = sphi 0, %s93
      %s110 = sphi 0, %s94
    $region4: #{tpu_custom_call.1} parent=1 // loop_header_branch
      %15 = sbr.rel (%p13) target = $region8
    $region5: #{tpu_custom_call.1} parent=1 // loop_body
      %s17 = ssub.s32 %s12, 1
      %s18 = ssub.s32 %s12, 2
      %s19 = sadd.s32 %s12, 1
      %s20 = ssub.s32 %s12, %s19
      %p21 = scmp.eq.s32.totalorder %s20, 0
      %s23 = sadd.s32 %s22, 1
      %s24 = scalar_select %p21, %s22, %s23
      %p27 = pneg %p21
      %p28 = scmp.eq.s32.totalorder %s12, 1
      %p29 = por %p27, %p28
      %p30 = scmp.ne.s32.totalorder %s22, %s25
      %p31 = scmp.eq.s32.totalorder %s12, 0
      %p32 = por %p30, %p31
      %p33 = scmp.ne.s32.totalorder %s22, %s25
      %p34 = scmp.eq.s32.totalorder %s17, 1
      %p35 = por %p33, %p34
      %p36 = scmp.ne.s32.totalorder %s25, %s26
      %p37 = scmp.eq.s32.totalorder %s17, 0
      %p38 = por %p36, %p37
      %p39 = scmp.ne.s32.totalorder %s25, %s26
      %p40 = scmp.eq.s32.totalorder %s18, 1
      %p41 = por %p39, %p40
      %p43 = scmp.ne.s32.totalorder %s26, %s42
      %p44 = scmp.eq.s32.totalorder %s18, 0
      %p45 = por %p43, %p44
      %s47 = sadd.s32 %s46, 1
      %p50 = scmp.eq.s32.totalorder %s12, 1
      %p51 = scmp.ne.s32.totalorder %s46, %s48
      %p52 = scmp.eq.s32.totalorder %s12, 0
      %p53 = por %p51, %p52
      %p54 = scmp.ne.s32.totalorder %s46, %s48
      %p55 = scmp.eq.s32.totalorder %s17, 1
      %p56 = por %p54, %p55
      %p57 = scmp.ne.s32.totalorder %s48, %s49
      %p58 = scmp.eq.s32.totalorder %s17, 0
      %p59 = por %p57, %p58
      %p60 = scmp.ne.s32.totalorder %s48, %s49
      %p61 = scmp.eq.s32.totalorder %s18, 1
      %p62 = por %p60, %p61
      %p64 = scmp.ne.s32.totalorder %s49, %s63
      %p65 = scmp.eq.s32.totalorder %s18, 0
      %p66 = por %p64, %p65
      %s68 = sadd.s32 %s67, 1
      %p71 = scmp.eq.s32.totalorder %s12, 1
      %p72 = scmp.ne.s32.totalorder %s67, %s69
      %p73 = scmp.eq.s32.totalorder %s12, 0
      %p74 = por %p72, %p73
      %p75 = scmp.ne.s32.totalorder %s67, %s69
      %p76 = scmp.eq.s32.totalorder %s17, 1
      %p77 = por %p75, %p76
      %p78 = scmp.ne.s32.totalorder %s69, %s70
      %p79 = scmp.eq.s32.totalorder %s17, 0
      %p80 = por %p78, %p79
      %p81 = scmp.ne.s32.totalorder %s69, %s70
      %p82 = scmp.eq.s32.totalorder %s18, 1
      %p83 = por %p81, %p82
      %p85 = scmp.ne.s32.totalorder %s70, %s84
      %p86 = scmp.eq.s32.totalorder %s18, 0
      %p87 = por %p85, %p86
      %s88 = ssub.s32 %s12, %s19
      %p89 = scmp.eq.s32.totalorder %s88, 0
      %s91 = sadd.s32 %s90, 1
      %s92 = scalar_select %p89, %s90, %s91
      %p95 = pneg %p89
      %p96 = scmp.eq.s32.totalorder %s12, 1
      %p97 = por %p95, %p96
      %p98 = scmp.ne.s32.totalorder %s90, %s93
      %p99 = scmp.eq.s32.totalorder %s12, 0
      %p100 = por %p98, %p99
      %p101 = scmp.ne.s32.totalorder %s90, %s93
      %p102 = scmp.eq.s32.totalorder %s17, 1
      %p103 = por %p101, %p102
      %p104 = scmp.ne.s32.totalorder %s93, %s94
      %p105 = scmp.eq.s32.totalorder %s17, 0
      %p106 = por %p104, %p105
      %p107 = scmp.ne.s32.totalorder %s93, %s94
      %p108 = scmp.eq.s32.totalorder %s18, 1
      %p109 = por %p107, %p108
      %p111 = scmp.ne.s32.totalorder %s94, %s110
      %p112 = scmp.eq.s32.totalorder %s18, 0
      %p113 = por %p111, %p112
      %p114 = scmp.le.s32.totalorder 1, %s12
      %p115 = scmp.lt.s32.totalorder %s12, 3
      %p116 = pnand %p114, %p115
      %p117 = pneg %p116
      // Predicated region
      $region9: #{tpu_custom_call.1} parent=5 // pred_check
        _
      $region10: #{tpu_custom_call.1} parent=5 // pred_check_branch
        %119 = sbr.rel (%p116) target = $region12
      $region11: #{tpu_custom_call.1} parent=5 // pred_region
        %s120 = ssub.s32 %s12, 1
        // Predicated region
        $region13: #{tpu_custom_call.1} parent=11 // pred_check
          %p121 = pneg %p59
        $region14: #{tpu_custom_call.1} parent=11 // pred_check_branch
          %123 = sbr.rel (%p121) target = $region16
        $region15: #{tpu_custom_call.1} parent=11 // pred_region
          _
        $region16: #{tpu_custom_call.1} parent=11 // pred_fallthru
          _
        // Predicated region
        $region17: #{tpu_custom_call.1} parent=11 // pred_check
          %p124 = pneg %p80
        $region18: #{tpu_custom_call.1} parent=11 // pred_check_branch
          %126 = sbr.rel (%p124) target = $region20
        $region19: #{tpu_custom_call.1} parent=11 // pred_region
          _
        $region20: #{tpu_custom_call.1} parent=11 // pred_fallthru
          _
      $region12: #{tpu_custom_call.1} parent=5 // pred_fallthru
        _
      %p127 = scmp.lt.s32.totalorder %s12, 2
      // Predicated region
      $region21: #{tpu_custom_call.1} parent=5 // pred_check
        %p128 = pneg %p127
      $region22: #{tpu_custom_call.1} parent=5 // pred_check_branch
        %130 = sbr.rel (%p128) target = $region24
      $region23: #{tpu_custom_call.1} parent=5 // pred_region
        // Predicated region
        $region25: #{tpu_custom_call.1} parent=23 // pred_check
          %p131 = pneg %p32
        $region26: #{tpu_custom_call.1} parent=23 // pred_check_branch
          %133 = sbr.rel (%p131) target = $region28
        $region27: #{tpu_custom_call.1} parent=23 // pred_region
          %p134 = scmp.lt.s32.totalorder %s12, 1
          %s135 = scalar_select %p134, %s12, 1
          %s136 = smul.addr %s135, 8
          %s137 = scalar_lea.vmem %s0, %s136
        $region28: #{tpu_custom_call.1} parent=23 // pred_fallthru
          _
      $region24: #{tpu_custom_call.1} parent=5 // pred_fallthru
        _
      %p138 = scmp.le.s32.totalorder 1, %s12
      %p139 = scmp.lt.s32.totalorder %s12, 3
      %p140 = pnand %p138, %p139
      %p141 = pneg %p140
      // Predicated region
      $region29: #{tpu_custom_call.1} parent=5 // pred_check
        _
      $region30: #{tpu_custom_call.1} parent=5 // pred_check_branch
        %143 = sbr.rel (%p140) target = $region32
      $region31: #{tpu_custom_call.1} parent=5 // pred_region
        %s144 = ssub.s32 %s12, 1
        %p145 = scmp.lt.s32.totalorder %s17, 1
        %s146 = scalar_select %p145, %s17, 1
        %s147 = smul.addr %s146, 8
        %s148 = scalar_lea.vmem %s0, %s147
        %p149 = pneg %p38
        %p150 = pneg %p35
        %p151 = pneg %p59
        %p152 = pneg %p56
        %p153 = pneg %p80
        %p154 = pneg %p77
        %p155 = pneg %p106
        %p156 = pneg %p103
        %s157 = sand.u32 %s93, 1
        %s158 = scalar_lea.sflag [#allocation3], %s157
        %s159 = sand.u32 %s93, 1
        %s160 = smul.addr %s159, 8
        %s161 = scalar_lea.vmem [#allocation2], %s160
        %p162 = scmp.lt.s32.totalorder %s17, 1
        %s163 = scalar_select %p162, %s17, 1
        %s164 = smul.addr %s163, 8
        %s165 = scalar_lea.vmem %s0, %s164
        %v166 = vld [vmem:[%s165] sm:$0xff]
        %v167 = vld [vmem:[%s1] sm:$0xff]
        %v168 = vld [vmem:[%s1 + $0x8] sm:$0xff]
        %v169 = vld [vmem:[%s1 + $0x10] sm:$0xff]
        %v170 = vld [vmem:[%s1 + $0x18] sm:$0xff]
        %vm171 = vcmask 261120
        %v173 = vsel %vm171, %v166, 0
        %175 = vmatprep.subr.mxu0 0.0
        %176 = vmatpush1.msra.mxu0 0.0
        %177 = vmatprep.subr.mxu0 0.0
        %178 = vmatpush1.msra.mxu0 0.0
        %179 = vmatprep.subr.mxu0 0.0
        %180 = vmatpush1.msra.mxu0 0.0
        %181 = vmatprep.subr.mxu0 0.0
        %182 = vmatpush1.msra.mxu0 0.0
        %183 = vmatprep.subr.mxu0 0.0
        %184 = vmatpush1.msra.mxu0 0.0
        %185 = vmatprep.subr.mxu0 0.0
        %186 = vmatpush1.msra.mxu0 0.0
        %187 = vmatprep.subr.mxu0 0.0
        %188 = vmatpush1.msra.mxu0 0.0
        %189 = vmatprep.subr.mxu0 0.0
        %190 = vmatpush1.msra.mxu0 0.0
        %191 = vmatprep.subr.mxu0 0.0
        %192 = vmatpush1.msra.mxu0 0.0
        %193 = vmatprep.subr.mxu0 0.0
        %194 = vmatpush1.msra.mxu0 0.0
        %195 = vmatprep.subr.mxu0 0.0
        %196 = vmatpush1.msra.mxu0 0.0
        %197 = vmatprep.subr.mxu0 0.0
        %198 = vmatpush1.msra.mxu0 0.0
        %199 = vmatprep.subr.mxu0 0.0
        %200 = vmatpush1.msra.mxu0 %v170
        %201 = vmatprep.subr.mxu0 0.0
        %202 = vmatpush1.msra.mxu0 %v169
        %203 = vmatprep.subr.mxu0 0.0
        %204 = vmatpush1.msra.mxu0 %v168
        %205 = vmatprep.subr.mxu0 0.0
        %206 = vmatpush1.msra.mxu0 %v167
        %207 = vmatprep.subr.mxu0 0.0
        %208 = vmatpush2.msra.mxu0 0.0
        %209 = vmatprep.subr.mxu0 0.0
        %210 = vmatpush2.msra.mxu0 0.0
        %211 = vmatprep.subr.mxu0 0.0
        %212 = vmatpush2.msra.mxu0 0.0
        %213 = vmatprep.subr.mxu0 0.0
        %214 = vmatpush2.msra.mxu0 0.0
        %215 = vmatprep.subr.mxu0 0.0
        %216 = vmatpush2.msra.mxu0 0.0
        %217 = vmatprep.subr.mxu0 0.0
        %218 = vmatpush2.msra.mxu0 0.0
        %219 = vmatprep.subr.mxu0 0.0
        %220 = vmatpush2.msra.mxu0 0.0
        %221 = vmatprep.subr.mxu0 0.0
        %222 = vmatpush2.msra.mxu0 0.0
        %223 = vmatprep.subr.mxu0 0.0
        %224 = vmatpush2.msra.mxu0 0.0
        %225 = vmatprep.subr.mxu0 0.0
        %226 = vmatpush2.msra.mxu0 0.0
        %227 = vmatprep.subr.mxu0 0.0
        %228 = vmatpush2.msra.mxu0 0.0
        %229 = vmatprep.subr.mxu0 0.0
        %230 = vmatpush2.msra.mxu0 0.0
        %231 = vmatprep.subr.mxu0 0.0
        %232 = vmatpush2.msra.mxu0 0.0
        %233 = vmatprep.subr.mxu0 0.0
        %234 = vmatpush2.msra.mxu0 0.0
        %235 = vmatprep.subr.mxu0 0.0
        %236 = vmatpush2.msra.mxu0 0.0
        %237 = vmatprep.subr.mxu0 0.0
        %238 = vmatpush2.msra.mxu0 0.0
        %239 = vmatprep.mubr.f32.mxu0 0.0
        %240 = vmatmul.mubr.f32.gmra.mxu0 %v173
        %v241 = vpop.f32.mrf.mxu0
        %v242 = vadd.f32 0.0, %v241
        %v243 = vpop.f32.mrf.mxu0
        %244 = vdwg.mxu0
        %v245 = vmul.f32 %v242, 0.25
        %v246 = vld [vmem:[%s2] sm:$0xf]
        %vm247 = vcmask 31744
        %v249 = vsel %vm247, %v245, 0
        %vm251 = vcmask 1043456
        %v253 = vsel %vm251, %v246, 0
        %255 = vmatprep.subr.mxu0 0.0
        %256 = vmatpush1.msra.mxu0 0.0
        %257 = vmatprep.subr.mxu0 0.0
        %258 = vmatpush1.msra.mxu0 0.0
        %259 = vmatprep.subr.mxu0 0.0
        %260 = vmatpush1.msra.mxu0 0.0
        %261 = vmatprep.subr.mxu0 0.0
        %262 = vmatpush1.msra.mxu0 0.0
        %263 = vmatprep.subr.mxu0 0.0
        %264 = vmatpush1.msra.mxu0 0.0
        %265 = vmatprep.subr.mxu0 0.0
        %266 = vmatpush1.msra.mxu0 0.0
        %267 = vmatprep.subr.mxu0 0.0
        %268 = vmatpush1.msra.mxu0 0.0
        %269 = vmatprep.subr.mxu0 0.0
        %270 = vmatpush1.msra.mxu0 0.0
        %271 = vmatprep.subr.mxu0 0.0
        %272 = vmatpush1.msra.mxu0 0.0
        %273 = vmatprep.subr.mxu0 0.0
        %274 = vmatpush1.msra.mxu0 0.0
        %275 = vmatprep.subr.mxu0 0.0
        %276 = vmatpush1.msra.mxu0 0.0
        %277 = vmatprep.subr.mxu0 0.0
        %278 = vmatpush1.msra.mxu0 0.0
        %279 = vmatprep.subr.mxu0 0.0
        %280 = vmatpush1.msra.mxu0 0.0
        %281 = vmatprep.subr.mxu0 0.0
        %282 = vmatpush1.msra.mxu0 0.0
        %283 = vmatprep.subr.mxu0 0.0
        %284 = vmatpush1.msra.mxu0 0.0
        %285 = vmatprep.subr.mxu0 0.0
        %286 = vmatpush1.msra.mxu0 %v253
        %287 = vmatprep.subr.mxu0 0.0
        %288 = vmatpush2.msra.mxu0 0.0
        %289 = vmatprep.subr.mxu0 0.0
        %290 = vmatpush2.msra.mxu0 0.0
        %291 = vmatprep.subr.mxu0 0.0
        %292 = vmatpush2.msra.mxu0 0.0
        %293 = vmatprep.subr.mxu0 0.0
        %294 = vmatpush2.msra.mxu0 0.0
        %295 = vmatprep.subr.mxu0 0.0
        %296 = vmatpush2.msra.mxu0 0.0
        %297 = vmatprep.subr.mxu0 0.0
        %298 = vmatpush2.msra.mxu0 0.0
        %299 = vmatprep.subr.mxu0 0.0
        %300 = vmatpush2.msra.mxu0 0.0
        %301 = vmatprep.subr.mxu0 0.0
        %302 = vmatpush2.msra.mxu0 0.0
        %303 = vmatprep.subr.mxu0 0.0
        %304 = vmatpush2.msra.mxu0 0.0
        %305 = vmatprep.subr.mxu0 0.0
        %306 = vmatpush2.msra.mxu0 0.0
        %307 = vmatprep.subr.mxu0 0.0
        %308 = vmatpush2.msra.mxu0 0.0
        %309 = vmatprep.subr.mxu0 0.0
        %310 = vmatpush2.msra.mxu0 0.0
        %311 = vmatprep.subr.mxu0 0.0
        %312 = vmatpush2.msra.mxu0 0.0
        %313 = vmatprep.subr.mxu0 0.0
        %314 = vmatpush2.msra.mxu0 0.0
        %315 = vmatprep.subr.mxu0 0.0
        %316 = vmatpush2.msra.mxu0 0.0
        %317 = vmatprep.subr.mxu0 0.0
        %318 = vmatpush2.msra.mxu0 0.0
        %319 = vmatprep.mubr.f32.mxu0 0.0
        %320 = vmatmul.mubr.f32.gmra.mxu0 %v249
        %v321 = vpop.f32.mrf.mxu0
        %v322 = vadd.f32 0.0, %v321
        %v323 = vpop.f32.mrf.mxu0
        %324 = vdwg.mxu0
        %325 = vst [vmem:[%s161] sm:$0xff] %v322
        %s326 = sand.u32 %s93, 1
        %s327 = scalar_lea.sflag [#allocation3], %s326
        %s328 = sand.u32 %s93, 1
        %s329 = smul.addr %s328, 8
        %s330 = scalar_lea.vmem [#allocation2], %s329
        // Predicated region
        $region33: #{tpu_custom_call.1} parent=31 // pred_check
          %p331 = pneg %p103
        $region34: #{tpu_custom_call.1} parent=31 // pred_check_branch
          %333 = sbr.rel (%p331) target = $region36
        $region35: #{tpu_custom_call.1} parent=31 // pred_region
          %s335 = ssub.s32 128, 128
          %336 = vsyncadd %s327, %s335
          %s337 = smul.addr %s17, 128
          %s338 = scalar_lea.hbm %s3, %s337
          %s340 = sshll.u32 %s330, 4
          %s341 = int_to_ptr.vmem [resolvable:$true] %s340
          %343 = dma.vmem_to_hbm [thread:$0]  %s341, 128, %s338, %s327
        $region36: #{tpu_custom_call.1} parent=31 // pred_fallthru
          _
      $region32: #{tpu_custom_call.1} parent=5 // pred_fallthru
        _
      %p344 = scmp.le.s32.totalorder 2, %s12
      // Predicated region
      $region37: #{tpu_custom_call.1} parent=5 // pred_check
        %p345 = pneg %p344
      $region38: #{tpu_custom_call.1} parent=5 // pred_check_branch
        %347 = sbr.rel (%p345) target = $region40
      $region39: #{tpu_custom_call.1} parent=5 // pred_region
        %s348 = ssub.s32 %s12, 2
        // Predicated region
        $region41: #{tpu_custom_call.1} parent=39 // pred_check
          %p349 = pneg %p109
        $region42: #{tpu_custom_call.1} parent=39 // pred_check_branch
          %351 = sbr.rel (%p349) target = $region44
        $region43: #{tpu_custom_call.1} parent=39 // pred_region
          %s352 = sand.u32 %s94, 1
          %s353 = scalar_lea.sflag [#allocation3], %s352
          %s354 = sand.u32 %s94, 1
          %s355 = smul.addr %s354, 8
          %s356 = scalar_lea.vmem [#allocation2], %s355
          %357 = dma.done %s353, 128
        $region44: #{tpu_custom_call.1} parent=39 // pred_fallthru
          _
      $region40: #{tpu_custom_call.1} parent=5 // pred_fallthru
        _
    $region6: #{tpu_custom_call.1} parent=1 // loop_footer
      %s16 = sadd.s32 1, %s12
    $region7: #{tpu_custom_call.1} parent=1 // loop_footer_branch
      %11 = sbr.rel target = $region3
    $region8: #{tpu_custom_call.1} parent=1 // loop_exit
      _
    %358 = vsyncpa [#allocation3], 1
    %s359 = scalar_lea.sflag [#allocation3], 1
    %360 = vsyncpa %s359, 1

</llo_original>
